<compile_context>
chip_gen: v5e
topology: v5e:2x2
jax: 0.10.0
libtpu: 0.0.40
codegen_flags: <defaults>
</compile_context>

<pallas_src>
import jax
import jax.numpy as jnp
from jax.experimental import pallas as pl
from jax.experimental.pallas import tpu as pltpu


def _round_up(x, m):
    return (x + m - 1) // m * m


def classifier_kernel(emb_ref, attr_ref, we_ref, be_ref, w1e_ref, w1a_ref,
                      b1_ref, w2_ref, b2_ref, out_ref):
    bf16 = jnp.bfloat16

    # edge_attr_emb = relu(attr @ We + be)   (bf16 MXU operands, f32 accumulation)
    a = jnp.dot(attr_ref[...].astype(bf16), we_ref[...],
                preferred_element_type=jnp.float32) + be_ref[...]
    a = jnp.maximum(a, 0.0)

    # cat([emb, edge_attr_emb]) @ W1 == emb @ W1e + edge_attr_emb @ W1a  (exact split)
    h = (jnp.dot(emb_ref[...].astype(bf16), w1e_ref[...],
                 preferred_element_type=jnp.float32)
         + jnp.dot(a.astype(bf16), w1a_ref[...],
                   preferred_element_type=jnp.float32)
         + b1_ref[...])
    h = jnp.maximum(h, 0.0)
    # TODO(synk): training-mode dropout (random mask + 1/(1-p) scaling) not implemented;
    # inference-mode dropout is identity.

    # logits over 128 padded class lanes; padded columns have bias -1e30 -> exp == 0.
    logits = jnp.dot(h.astype(bf16), w2_ref[...],
                     preferred_element_type=jnp.float32) + b2_ref[...]

    # Row-wise softmax in f32 with EXACT division so every output row sums to 1
    # to f32 rounding (approx reciprocal previously broke the row-sum check).
    m = jnp.max(logits, axis=-1, keepdims=True)
    e = jnp.exp(logits - m)
    denom = jnp.sum(e, axis=-1, keepdims=True)
    n_out = out_ref.shape[-1]
    out_ref[...] = (e[:, :n_out] / denom).astype(out_ref.dtype)


def prepare_params(we, be, w1, b1, w2, b2, d_emb):
    """One-time weight padding/casting (hoisted out of the per-call forward).

    Weights are stored pre-transposed as [in, out]. Hidden and class dims are
    zero-padded to 128 lanes: padded hidden columns have zero weights/biases so
    they contribute exactly 0; padded class columns carry bias -1e30 so they
    vanish exactly under softmax.
    """
    f32, bf16 = jnp.float32, jnp.bfloat16
    n_edge_attr, h_dim = we.shape
    n_out = w2.shape[1]
    h_pad = _round_up(h_dim, 128)
    out_pad = _round_up(n_out, 128)

    w1e, w1a = w1[:d_emb], w1[d_emb:]

    we_p = jnp.zeros((n_edge_attr, h_pad), bf16).at[:, :h_dim].set(we.astype(bf16))
    be_p = jnp.zeros((1, h_pad), f32).at[:, :h_dim].set(be.astype(f32))
    w1e_p = jnp.zeros((d_emb, h_pad), bf16).at[:, :h_dim].set(w1e.astype(bf16))
    w1a_p = jnp.zeros((h_pad, h_pad), bf16).at[:h_dim, :h_dim].set(w1a.astype(bf16))
    b1_p = jnp.zeros((1, h_pad), f32).at[:, :h_dim].set(b1.astype(f32))
    w2_p = jnp.zeros((h_pad, out_pad), bf16).at[:h_dim, :n_out].set(w2.astype(bf16))
    b2_p = jnp.full((1, out_pad), jnp.float32(-1e30), f32).at[:, :n_out].set(b2.astype(f32))
    return (we_p, be_p, w1e_p, w1a_p, b1_p, w2_p, b2_p), n_out


def _pick_tile_n(n, max_tile=1024):
    # Aim for >= ~4 grid steps (so v7x's two TensorCores both get work via the
    # "parallel" batch axis) while capping the tile at 1024 rows; per-step f32
    # intermediates at 1024x128 are ~3 MiB, far under v5e's 16 MiB scoped VMEM
    # default, so no vmem_limit_bytes override is required.
    t = _round_up(pl.cdiv(n, 4), 8)
    return int(max(8, min(max_tile, t)))


def classifier_forward(emb, attr, params, n_out, *, tile_n=None):
    """Pallas forward of Classifier (eval mode).

    emb:  [N, d_emb] f32   (d_emb = 2*n_hidden)
    attr: [N, n_edge_attr] f32
    params: output of prepare_params (padded, bf16 weights / f32 biases)
    returns [N, n_out] float32 probabilities (rows sum to 1).
    """
    n, d_emb = emb.shape
    n_edge_attr = attr.shape[1]
    we_p, be_p, w1e_p, w1a_p, b1_p, w2_p, b2_p = params
    h_pad = we_p.shape[1]
    out_pad = w2_p.shape[1]

    if tile_n is None:
        tile_n = _pick_tile_n(n)
    # Partial last block (N not a multiple of tile_n) is handled by Pallas'
    # masked writeback; garbage rows only affect their own (masked-out) output
    # rows because softmax has no cross-row coupling.
    grid_n = pl.cdiv(n, tile_n)

    const = lambda a: pl.BlockSpec(a.shape, lambda i: (0, 0))  # VMEM-resident weights

    cost = pl.CostEstimate(
        flops=int(2 * n * (n_edge_attr * h_pad + d_emb * h_pad
                           + h_pad * h_pad + h_pad * out_pad)),
        transcendentals=int(n * out_pad),
        bytes_accessed=int(n * (d_emb + n_edge_attr) * 4                 # f32 activations
                           + 2 * (we_p.size + w1e_p.size + w1a_p.size + w2_p.size)
                           + 4 * (be_p.size + b1_p.size + b2_p.size)
                           + n * n_out * 4),                             # narrow f32 output
    )

    return pl.pallas_call(
        classifier_kernel,
        out_shape=jax.ShapeDtypeStruct((n, n_out), jnp.float32),
        grid_spec=pltpu.PrefetchScalarGridSpec(
            num_scalar_prefetch=0,
            grid=(grid_n,),
            in_specs=[
                pl.BlockSpec((tile_n, d_emb), lambda i: (i, 0)),        # emb tile (f32)
                pl.BlockSpec((tile_n, n_edge_attr), lambda i: (i, 0)),  # attr tile (f32)
                const(we_p), const(be_p),
                const(w1e_p), const(w1a_p), const(b1_p),
                const(w2_p), const(b2_p),
            ],
            out_specs=pl.BlockSpec((tile_n, n_out), lambda i: (i, 0)),
        ),
        compiler_params=pltpu.CompilerParams(
            dimension_semantics=("parallel",)),
        cost_estimate=cost,
    )(emb, attr, we_p, be_p, w1e_p, w1a_p, b1_p, w2_p, b2_p)


def make_params(key, n_edge_attr, n_hidden, n_out, d_emb):
    """nn.Linear-style uniform(-1/sqrt(fan_in), 1/sqrt(fan_in)) init.
    Weights stored pre-transposed as [in, out] (PyTorch [out, in] transposed)."""
    keys = jax.random.split(key, 6)

    def lin(kw, kb, fan_in, fan_out):
        lim = 1.0 / jnp.sqrt(jnp.float32(fan_in))
        w = jax.random.uniform(kw, (fan_in, fan_out), jnp.float32, -lim, lim)
        b = jax.random.uniform(kb, (1, fan_out), jnp.float32, -lim, lim)
        return w, b

    we, be = lin(keys[0], keys[1], n_edge_attr, n_hidden)          # edge_attr_lin
    w1, b1 = lin(keys[2], keys[3], d_emb + n_hidden, n_hidden)     # classifier_1 ('concat')
    w2, b2 = lin(keys[4], keys[5], n_hidden, n_out)                # classifier_2
    return we, be, w1, b1, w2, b2


if __name__ == "__main__":
    # Shapes implied by the module with args.method == 'concat':
    # emb is [N, 2*n_hidden], classifier_1 input dim is 3*n_hidden.
    n_hidden = 32
    n_out = 4
    n_edge_attr = 16
    batch = 256
    d_emb = n_hidden * 2

    key = jax.random.PRNGKey(0)
    k_emb, k_attr, k_par = jax.random.split(key, 3)
    emb = jax.random.normal(k_emb, (batch, d_emb), jnp.float32)
    attr = jax.random.normal(k_attr, (batch, n_edge_attr), jnp.float32)
    we, be, w1, b1, w2, b2 = make_params(k_par, n_edge_attr, n_hidden, n_out, d_emb)

    # One-time parameter prep (padding / bf16 casting) outside the hot path.
    params, _ = prepare_params(we, be, w1, b1, w2, b2, d_emb)
    params = jax.block_until_ready(params)

    out = classifier_forward(emb, attr, params, n_out)
    out = jax.block_until_ready(out)
    assert out.shape == (batch, n_out)

    # Reference mirroring the kernel math (bf16 matmul operands, f32 accumulation,
    # exact softmax division).
    bf = jnp.bfloat16
    a_ref = jnp.maximum(
        jnp.dot(attr.astype(bf), we.astype(bf), preferred_element_type=jnp.float32) + be, 0.0)
    cat = jnp.concatenate([emb, a_ref], axis=1)
    h_ref = jnp.maximum(
        jnp.dot(cat.astype(bf), w1.astype(bf), preferred_element_type=jnp.float32) + b1, 0.0)
    logits_ref = jnp.dot(h_ref.astype(bf), w2.astype(bf),
                         preferred_element_type=jnp.float32) + b2
    ref = jax.nn.softmax(logits_ref, axis=1)

    assert jnp.allclose(out, ref, atol=2e-3, rtol=1e-2), float(jnp.max(jnp.abs(out - ref)))
    # Exact division in the kernel -> rows sum to 1 within f32 rounding.
    assert jnp.allclose(jnp.sum(out, axis=1), 1.0, atol=2e-3)

    # Loose sanity check against the full-f32 (PyTorch-equivalent) path.
    a32 = jnp.maximum(attr @ we + be, 0.0)
    h32 = jnp.maximum(jnp.concatenate([emb, a32], axis=1) @ w1 + b1, 0.0)
    ref32 = jax.nn.softmax(h32 @ w2 + b2, axis=1)
    assert jnp.allclose(out, ref32, atol=5e-2)

    print("KERNEL_OK")
</pallas_src>

<mosaic_0001>
module attributes {stable_mosaic.version = 11 : i64} {
  func.func @classifier_kernel(%arg0: i32, %arg1: memref<64x64xf32, #tpu.memory_space<vmem>>, %arg2: memref<64x16xf32, #tpu.memory_space<vmem>>, %arg3: memref<16x128xbf16, #tpu.memory_space<vmem>>, %arg4: memref<1x128xf32, #tpu.memory_space<vmem>>, %arg5: memref<64x128xbf16, #tpu.memory_space<vmem>>, %arg6: memref<128x128xbf16, #tpu.memory_space<vmem>>, %arg7: memref<1x128xf32, #tpu.memory_space<vmem>>, %arg8: memref<128x128xbf16, #tpu.memory_space<vmem>>, %arg9: memref<1x128xf32, #tpu.memory_space<vmem>>, %arg10: memref<64x4xf32, #tpu.memory_space<vmem>>) attributes {dimension_semantics = [#tpu.dimension_semantics<parallel>], iteration_bounds = array<i64: 4>, scalar_prefetch = 0 : i64, scratch_operands = 0 : i64, tpu.core_type = #tpu.core_type<tc>, window_params = [{transform_indices = @transform_0, window_bounds = array<i64: 64, 64>}, {transform_indices = @transform_1, window_bounds = array<i64: 64, 16>}, {pipeline_mode = #tpu.pipeline_mode<synchronous>, transform_indices = @transform_2, window_bounds = array<i64: 16, 128>}, {pipeline_mode = #tpu.pipeline_mode<synchronous>, transform_indices = @transform_3, window_bounds = array<i64: 1, 128>}, {pipeline_mode = #tpu.pipeline_mode<synchronous>, transform_indices = @transform_4, window_bounds = array<i64: 64, 128>}, {pipeline_mode = #tpu.pipeline_mode<synchronous>, transform_indices = @transform_5, window_bounds = array<i64: 128, 128>}, {pipeline_mode = #tpu.pipeline_mode<synchronous>, transform_indices = @transform_6, window_bounds = array<i64: 1, 128>}, {pipeline_mode = #tpu.pipeline_mode<synchronous>, transform_indices = @transform_7, window_bounds = array<i64: 128, 128>}, {pipeline_mode = #tpu.pipeline_mode<synchronous>, transform_indices = @transform_8, window_bounds = array<i64: 1, 128>}, {transform_indices = @transform_9, window_bounds = array<i64: 64, 4>}]} {
    %c0 = arith.constant 0 : index
    %c0_0 = arith.constant 0 : index
    %0 = vector.load %arg2[%c0, %c0_0] : memref<64x16xf32, #tpu.memory_space<vmem>>, vector<64x16xf32>
    %1 = arith.truncf %0 : vector<64x16xf32> to vector<64x16xbf16>
    %c0_1 = arith.constant 0 : index
    %c0_2 = arith.constant 0 : index
    %2 = vector.load %arg3[%c0_1, %c0_2] : memref<16x128xbf16, #tpu.memory_space<vmem>>, vector<16x128xbf16>
    %cst = arith.constant dense<0.000000e+00> : vector<64x128xf32>
    %3 = tpu.matmul %1, %2, %cst {dimension_numbers = #tpu.dot_dimension_numbers<[1], [0], [0], [1], [0, 0, 1, 1], [], []>} : vector<64x16xbf16>, vector<16x128xbf16>, vector<64x128xf32> -> vector<64x128xf32>
    %c0_3 = arith.constant 0 : index
    %c0_4 = arith.constant 0 : index
    %4 = vector.load %arg4[%c0_3, %c0_4] : memref<1x128xf32, #tpu.memory_space<vmem>>, vector<1x128xf32>
    %5 = vector.broadcast %4 : vector<1x128xf32> to vector<64x128xf32>
    %6 = arith.addf %3, %5 : vector<64x128xf32>
    %cst_5 = arith.constant 0.000000e+00 : f32
    %7 = vector.broadcast %cst_5 : f32 to vector<64x128xf32>
    %8 = arith.maximumf %6, %7 : vector<64x128xf32>
    %c0_6 = arith.constant 0 : index
    %c0_7 = arith.constant 0 : index
    %9 = vector.load %arg1[%c0_6, %c0_7] : memref<64x64xf32, #tpu.memory_space<vmem>>, vector<64x64xf32>
    %10 = arith.truncf %9 : vector<64x64xf32> to vector<64x64xbf16>
    %c0_8 = arith.constant 0 : index
    %c0_9 = arith.constant 0 : index
    %11 = vector.load %arg5[%c0_8, %c0_9] : memref<64x128xbf16, #tpu.memory_space<vmem>>, vector<64x128xbf16>
    %cst_10 = arith.constant dense<0.000000e+00> : vector<64x128xf32>
    %12 = tpu.matmul %10, %11, %cst_10 {dimension_numbers = #tpu.dot_dimension_numbers<[1], [0], [0], [1], [0, 0, 1, 1], [], []>} : vector<64x64xbf16>, vector<64x128xbf16>, vector<64x128xf32> -> vector<64x128xf32>
    %13 = arith.truncf %8 : vector<64x128xf32> to vector<64x128xbf16>
    %c0_11 = arith.constant 0 : index
    %c0_12 = arith.constant 0 : index
    %14 = vector.load %arg6[%c0_11, %c0_12] : memref<128x128xbf16, #tpu.memory_space<vmem>>, vector<128x128xbf16>
    %cst_13 = arith.constant dense<0.000000e+00> : vector<64x128xf32>
    %15 = tpu.matmul %13, %14, %cst_13 {dimension_numbers = #tpu.dot_dimension_numbers<[1], [0], [0], [1], [0, 0, 1, 1], [], []>} : vector<64x128xbf16>, vector<128x128xbf16>, vector<64x128xf32> -> vector<64x128xf32>
    %16 = arith.addf %12, %15 : vector<64x128xf32>
    %c0_14 = arith.constant 0 : index
    %c0_15 = arith.constant 0 : index
    %17 = vector.load %arg7[%c0_14, %c0_15] : memref<1x128xf32, #tpu.memory_space<vmem>>, vector<1x128xf32>
    %18 = vector.broadcast %17 : vector<1x128xf32> to vector<64x128xf32>
    %19 = arith.addf %16, %18 : vector<64x128xf32>
    %cst_16 = arith.constant 0.000000e+00 : f32
    %20 = vector.broadcast %cst_16 : f32 to vector<64x128xf32>
    %21 = arith.maximumf %19, %20 : vector<64x128xf32>
    %22 = arith.truncf %21 : vector<64x128xf32> to vector<64x128xbf16>
    %c0_17 = arith.constant 0 : index
    %c0_18 = arith.constant 0 : index
    %23 = vector.load %arg8[%c0_17, %c0_18] : memref<128x128xbf16, #tpu.memory_space<vmem>>, vector<128x128xbf16>
    %cst_19 = arith.constant dense<0.000000e+00> : vector<64x128xf32>
    %24 = tpu.matmul %22, %23, %cst_19 {dimension_numbers = #tpu.dot_dimension_numbers<[1], [0], [0], [1], [0, 0, 1, 1], [], []>} : vector<64x128xbf16>, vector<128x128xbf16>, vector<64x128xf32> -> vector<64x128xf32>
    %c0_20 = arith.constant 0 : index
    %c0_21 = arith.constant 0 : index
    %25 = vector.load %arg9[%c0_20, %c0_21] : memref<1x128xf32, #tpu.memory_space<vmem>>, vector<1x128xf32>
    %26 = vector.broadcast %25 : vector<1x128xf32> to vector<64x128xf32>
    %27 = arith.addf %24, %26 : vector<64x128xf32>
    %cst_22 = arith.constant dense<0xFF800000> : vector<64xf32>
    %28 = vector.multi_reduction <maximumf>, %27, %cst_22 [1] : vector<64x128xf32> to vector<64xf32>
    %29 = vector.shape_cast %28 : vector<64xf32> to vector<64x1xf32>
    %30 = vector.broadcast %29 : vector<64x1xf32> to vector<64x128xf32>
    %31 = arith.subf %27, %30 : vector<64x128xf32>
    %32 = math.exp %31 : vector<64x128xf32>
    %cst_23 = arith.constant dense<0.000000e+00> : vector<64xf32>
    %33 = vector.multi_reduction <add>, %32, %cst_23 [1] : vector<64x128xf32> to vector<64xf32>
    %34 = vector.shape_cast %33 : vector<64xf32> to vector<64x1xf32>
    %35 = vector.extract_strided_slice %32 {offsets = [0, 0], sizes = [64, 4], strides = [1, 1]} : vector<64x128xf32> to vector<64x4xf32>
    %36 = vector.broadcast %34 : vector<64x1xf32> to vector<64x4xf32>
    %37 = arith.divf %35, %36 : vector<64x4xf32>
    %c0_24 = arith.constant 0 : index
    %c0_25 = arith.constant 0 : index
    %38 = vector.load %arg10[%c0_24, %c0_25] : memref<64x4xf32, #tpu.memory_space<vmem>>, vector<64x4xf32>
    tpu.vector_store %arg10[%c0_24, %c0_25], %37 {strides = array<i32>} : memref<64x4xf32, #tpu.memory_space<vmem>>, vector<64x4xf32>,
    return
  }
  func.func @transform_0(%arg0: i32) -> (i32, i32) {
    %c0_i32 = arith.constant 0 : i32
    %c0_i32_0 = arith.constant 0 : i32
    return %arg0, %c0_i32 : i32, i32
  }
  func.func @transform_1(%arg0: i32) -> (i32, i32) {
    %c0_i32 = arith.constant 0 : i32
    %c0_i32_0 = arith.constant 0 : i32
    return %arg0, %c0_i32 : i32, i32
  }
  func.func @transform_2(%arg0: i32) -> (i32, i32) {
    %c0_i32 = arith.constant 0 : i32
    %c0_i32_0 = arith.constant 0 : i32
    %c0_i32_1 = arith.constant 0 : i32
    return %c0_i32, %c0_i32_0 : i32, i32
  }
  func.func @transform_3(%arg0: i32) -> (i32, i32) {
    %c0_i32 = arith.constant 0 : i32
    %c0_i32_0 = arith.constant 0 : i32
    %c0_i32_1 = arith.constant 0 : i32
    return %c0_i32, %c0_i32_0 : i32, i32
  }
  func.func @transform_4(%arg0: i32) -> (i32, i32) {
    %c0_i32 = arith.constant 0 : i32
    %c0_i32_0 = arith.constant 0 : i32
    %c0_i32_1 = arith.constant 0 : i32
    return %c0_i32, %c0_i32_0 : i32, i32
  }
  func.func @transform_5(%arg0: i32) -> (i32, i32) {
    %c0_i32 = arith.constant 0 : i32
    %c0_i32_0 = arith.constant 0 : i32
    %c0_i32_1 = arith.constant 0 : i32
    return %c0_i32, %c0_i32_0 : i32, i32
  }
  func.func @transform_6(%arg0: i32) -> (i32, i32) {
    %c0_i32 = arith.constant 0 : i32
    %c0_i32_0 = arith.constant 0 : i32
    %c0_i32_1 = arith.constant 0 : i32
    return %c0_i32, %c0_i32_0 : i32, i32
  }
  func.func @transform_7(%arg0: i32) -> (i32, i32) {
    %c0_i32 = arith.constant 0 : i32
    %c0_i32_0 = arith.constant 0 : i32
    %c0_i32_1 = arith.constant 0 : i32
    return %c0_i32, %c0_i32_0 : i32, i32
  }
  func.func @transform_8(%arg0: i32) -> (i32, i32) {
    %c0_i32 = arith.constant 0 : i32
    %c0_i32_0 = arith.constant 0 : i32
    %c0_i32_1 = arith.constant 0 : i32
    return %c0_i32, %c0_i32_0 : i32, i32
  }
  func.func @transform_9(%arg0: i32) -> (i32, i32) {
    %c0_i32 = arith.constant 0 : i32
    %c0_i32_0 = arith.constant 0 : i32
    return %arg0, %c0_i32 : i32, i32
  }
}

</mosaic_0001>

<llo_original>
// kernel: tpu_custom_call.1
$region0: #{tpu_custom_call.1}
  #allocation0 [shape = 'u32[]', space=smem, size = 0x4, offset = 0x4, fixed_abs, tag = 'smem constant byte address 0x4 - core index']
  #allocation1 [shape = 'u32[72,128]{1,0:T(1,128)}', space=vmem, size = 0x9000, scoped, tag = 'internal scratch']
  %s0 = inlined_call_operand.vmem [shape: f32[256,64], index: 0, kind: input, shape index: {}]
  %s1 = inlined_call_operand.vmem [shape: f32[256,16], index: 1, kind: input, shape index: {}]
  %s2 = inlined_call_operand.vmem [shape: bf16[16,128], index: 2, kind: input, shape index: {}]
  %s3 = inlined_call_operand.vmem [shape: f32[1,128], index: 3, kind: input, shape index: {}]
  %s4 = inlined_call_operand.vmem [shape: bf16[64,128], index: 4, kind: input, shape index: {}]
  %s5 = inlined_call_operand.vmem [shape: bf16[128,128], index: 5, kind: input, shape index: {}]
  %s6 = inlined_call_operand.vmem [shape: f32[1,128], index: 6, kind: input, shape index: {}]
  %s7 = inlined_call_operand.vmem [shape: bf16[128,128], index: 7, kind: input, shape index: {}]
  %s8 = inlined_call_operand.vmem [shape: f32[1,128], index: 8, kind: input, shape index: {}]
  %s9 = inlined_call_operand.vmem [shape: f32[256,4], index: 9, kind: output, shape index: {}]
  %s10 = sld [smem:[#allocation0]]
  $region69: #{tpu_custom_call.1} parent=0
    _
  %s12 = ssub.s32 1, %s10
  %s13 = scalar_select 0, %s12, %s10
  loop: start=0, step=1, limit=6
  $region2: #{tpu_custom_call.1} parent=0 // loop_pre_header
    _
  $region3: #{tpu_custom_call.1} parent=0 // loop_header
    %s15 = sphi 0, %s19
    %p16 = scmp.ge.s32.totalorder %s15, 6
    %s25 = sphi 0, %s27
    %s28 = sphi 0, %s25
    %s29 = sphi 0, %s28
    %s45 = sphi 0, %s29
    %s51 = sphi 0, %s53
    %s54 = sphi 0, %s51
    %s55 = sphi 0, %s54
    %s71 = sphi 0, %s55
    %s75 = sphi 0, %s75
    %s77 = sphi 0, %s75
    %s78 = sphi 0, %s77
    %s92 = sphi 0, %s78
    %s96 = sphi 0, %s96
    %s98 = sphi 0, %s96
    %s99 = sphi 0, %s98
    %s113 = sphi 0, %s99
    %s117 = sphi 0, %s117
    %s119 = sphi 0, %s117
    %s120 = sphi 0, %s119
    %s134 = sphi 0, %s120
    %s138 = sphi 0, %s138
    %s140 = sphi 0, %s138
    %s141 = sphi 0, %s140
    %s155 = sphi 0, %s141
    %s159 = sphi 0, %s159
    %s161 = sphi 0, %s159
    %s162 = sphi 0, %s161
    %s176 = sphi 0, %s162
    %s180 = sphi 0, %s180
    %s182 = sphi 0, %s180
    %s183 = sphi 0, %s182
    %s197 = sphi 0, %s183
    %s201 = sphi 0, %s201
    %s203 = sphi 0, %s201
    %s204 = sphi 0, %s203
    %s218 = sphi 0, %s204
    %s224 = sphi 0, %s226
    %s227 = sphi 0, %s224
    %s228 = sphi 0, %s227
    %s244 = sphi 0, %s228
  $region4: #{tpu_custom_call.1} parent=0 // loop_header_branch
    %18 = sbr.rel (%p16) target = $region8
  $region5: #{tpu_custom_call.1} parent=0 // loop_body
    %s20 = ssub.s32 %s15, 1
    %s21 = ssub.s32 %s15, 2
    %s22 = sadd.s32 %s15, 1
    %s23 = ssub.s32 %s15, %s22
    %p24 = scmp.eq.s32.totalorder %s23, 0
    %s26 = sadd.s32 %s25, 1
    %s27 = scalar_select %p24, %s25, %s26
    %p30 = pneg %p24
    %p31 = scmp.eq.s32.totalorder %s15, 3
    %p32 = por %p30, %p31
    %p33 = scmp.ne.s32.totalorder %s25, %s28
    %p34 = scmp.eq.s32.totalorder %s15, 0
    %p35 = por %p33, %p34
    %p36 = scmp.ne.s32.totalorder %s25, %s28
    %p37 = scmp.eq.s32.totalorder %s20, 3
    %p38 = por %p36, %p37
    %p39 = scmp.ne.s32.totalorder %s28, %s29
    %p40 = scmp.eq.s32.totalorder %s20, 0
    %p41 = por %p39, %p40
    %p42 = scmp.ne.s32.totalorder %s28, %s29
    %p43 = scmp.eq.s32.totalorder %s21, 3
    %p44 = por %p42, %p43
    %p46 = scmp.ne.s32.totalorder %s29, %s45
    %p47 = scmp.eq.s32.totalorder %s21, 0
    %p48 = por %p46, %p47
    %s49 = ssub.s32 %s15, %s22
    %p50 = scmp.eq.s32.totalorder %s49, 0
    %s52 = sadd.s32 %s51, 1
    %s53 = scalar_select %p50, %s51, %s52
    %p56 = pneg %p50
    %p57 = scmp.eq.s32.totalorder %s15, 3
    %p58 = por %p56, %p57
    %p59 = scmp.ne.s32.totalorder %s51, %s54
    %p60 = scmp.eq.s32.totalorder %s15, 0
    %p61 = por %p59, %p60
    %p62 = scmp.ne.s32.totalorder %s51, %s54
    %p63 = scmp.eq.s32.totalorder %s20, 3
    %p64 = por %p62, %p63
    %p65 = scmp.ne.s32.totalorder %s54, %s55
    %p66 = scmp.eq.s32.totalorder %s20, 0
    %p67 = por %p65, %p66
    %p68 = scmp.ne.s32.totalorder %s54, %s55
    %p69 = scmp.eq.s32.totalorder %s21, 3
    %p70 = por %p68, %p69
    %p72 = scmp.ne.s32.totalorder %s55, %s71
    %p73 = scmp.eq.s32.totalorder %s21, 0
    %p74 = por %p72, %p73
    %s76 = sadd.s32 %s75, 1
    %p79 = scmp.eq.s32.totalorder %s15, 3
    %p80 = scmp.ne.s32.totalorder %s75, %s77
    %p81 = scmp.eq.s32.totalorder %s15, 0
    %p82 = por %p80, %p81
    %p83 = scmp.ne.s32.totalorder %s75, %s77
    %p84 = scmp.eq.s32.totalorder %s20, 3
    %p85 = por %p83, %p84
    %p86 = scmp.ne.s32.totalorder %s77, %s78
    %p87 = scmp.eq.s32.totalorder %s20, 0
    %p88 = por %p86, %p87
    %p89 = scmp.ne.s32.totalorder %s77, %s78
    %p90 = scmp.eq.s32.totalorder %s21, 3
    %p91 = por %p89, %p90
    %p93 = scmp.ne.s32.totalorder %s78, %s92
    %p94 = scmp.eq.s32.totalorder %s21, 0
    %p95 = por %p93, %p94
    %s97 = sadd.s32 %s96, 1
    %p100 = scmp.eq.s32.totalorder %s15, 3
    %p101 = scmp.ne.s32.totalorder %s96, %s98
    %p102 = scmp.eq.s32.totalorder %s15, 0
    %p103 = por %p101, %p102
    %p104 = scmp.ne.s32.totalorder %s96, %s98
    %p105 = scmp.eq.s32.totalorder %s20, 3
    %p106 = por %p104, %p105
    %p107 = scmp.ne.s32.totalorder %s98, %s99
    %p108 = scmp.eq.s32.totalorder %s20, 0
    %p109 = por %p107, %p108
    %p110 = scmp.ne.s32.totalorder %s98, %s99
    %p111 = scmp.eq.s32.totalorder %s21, 3
    %p112 = por %p110, %p111
    %p114 = scmp.ne.s32.totalorder %s99, %s113
    %p115 = scmp.eq.s32.totalorder %s21, 0
    %p116 = por %p114, %p115
    %s118 = sadd.s32 %s117, 1
    %p121 = scmp.eq.s32.totalorder %s15, 3
    %p122 = scmp.ne.s32.totalorder %s117, %s119
    %p123 = scmp.eq.s32.totalorder %s15, 0
    %p124 = por %p122, %p123
    %p125 = scmp.ne.s32.totalorder %s117, %s119
    %p126 = scmp.eq.s32.totalorder %s20, 3
    %p127 = por %p125, %p126
    %p128 = scmp.ne.s32.totalorder %s119, %s120
    %p129 = scmp.eq.s32.totalorder %s20, 0
    %p130 = por %p128, %p129
    %p131 = scmp.ne.s32.totalorder %s119, %s120
    %p132 = scmp.eq.s32.totalorder %s21, 3
    %p133 = por %p131, %p132
    %p135 = scmp.ne.s32.totalorder %s120, %s134
    %p136 = scmp.eq.s32.totalorder %s21, 0
    %p137 = por %p135, %p136
    %s139 = sadd.s32 %s138, 1
    %p142 = scmp.eq.s32.totalorder %s15, 3
    %p143 = scmp.ne.s32.totalorder %s138, %s140
    %p144 = scmp.eq.s32.totalorder %s15, 0
    %p145 = por %p143, %p144
    %p146 = scmp.ne.s32.totalorder %s138, %s140
    %p147 = scmp.eq.s32.totalorder %s20, 3
    %p148 = por %p146, %p147
    %p149 = scmp.ne.s32.totalorder %s140, %s141
    %p150 = scmp.eq.s32.totalorder %s20, 0
    %p151 = por %p149, %p150
    %p152 = scmp.ne.s32.totalorder %s140, %s141
    %p153 = scmp.eq.s32.totalorder %s21, 3
    %p154 = por %p152, %p153
    %p156 = scmp.ne.s32.totalorder %s141, %s155
    %p157 = scmp.eq.s32.totalorder %s21, 0
    %p158 = por %p156, %p157
    %s160 = sadd.s32 %s159, 1
    %p163 = scmp.eq.s32.totalorder %s15, 3
    %p164 = scmp.ne.s32.totalorder %s159, %s161
    %p165 = scmp.eq.s32.totalorder %s15, 0
    %p166 = por %p164, %p165
    %p167 = scmp.ne.s32.totalorder %s159, %s161
    %p168 = scmp.eq.s32.totalorder %s20, 3
    %p169 = por %p167, %p168
    %p170 = scmp.ne.s32.totalorder %s161, %s162
    %p171 = scmp.eq.s32.totalorder %s20, 0
    %p172 = por %p170, %p171
    %p173 = scmp.ne.s32.totalorder %s161, %s162
    %p174 = scmp.eq.s32.totalorder %s21, 3
    %p175 = por %p173, %p174
    %p177 = scmp.ne.s32.totalorder %s162, %s176
    %p178 = scmp.eq.s32.totalorder %s21, 0
    %p179 = por %p177, %p178
    %s181 = sadd.s32 %s180, 1
    %p184 = scmp.eq.s32.totalorder %s15, 3
    %p185 = scmp.ne.s32.totalorder %s180, %s182
    %p186 = scmp.eq.s32.totalorder %s15, 0
    %p187 = por %p185, %p186
    %p188 = scmp.ne.s32.totalorder %s180, %s182
    %p189 = scmp.eq.s32.totalorder %s20, 3
    %p190 = por %p188, %p189
    %p191 = scmp.ne.s32.totalorder %s182, %s183
    %p192 = scmp.eq.s32.totalorder %s20, 0
    %p193 = por %p191, %p192
    %p194 = scmp.ne.s32.totalorder %s182, %s183
    %p195 = scmp.eq.s32.totalorder %s21, 3
    %p196 = por %p194, %p195
    %p198 = scmp.ne.s32.totalorder %s183, %s197
    %p199 = scmp.eq.s32.totalorder %s21, 0
    %p200 = por %p198, %p199
    %s202 = sadd.s32 %s201, 1
    %p205 = scmp.eq.s32.totalorder %s15, 3
    %p206 = scmp.ne.s32.totalorder %s201, %s203
    %p207 = scmp.eq.s32.totalorder %s15, 0
    %p208 = por %p206, %p207
    %p209 = scmp.ne.s32.totalorder %s201, %s203
    %p210 = scmp.eq.s32.totalorder %s20, 3
    %p211 = por %p209, %p210
    %p212 = scmp.ne.s32.totalorder %s203, %s204
    %p213 = scmp.eq.s32.totalorder %s20, 0
    %p214 = por %p212, %p213
    %p215 = scmp.ne.s32.totalorder %s203, %s204
    %p216 = scmp.eq.s32.totalorder %s21, 3
    %p217 = por %p215, %p216
    %p219 = scmp.ne.s32.totalorder %s204, %s218
    %p220 = scmp.eq.s32.totalorder %s21, 0
    %p221 = por %p219, %p220
    %s222 = ssub.s32 %s15, %s22
    %p223 = scmp.eq.s32.totalorder %s222, 0
    %s225 = sadd.s32 %s224, 1
    %s226 = scalar_select %p223, %s224, %s225
    %p229 = pneg %p223
    %p230 = scmp.eq.s32.totalorder %s15, 3
    %p231 = por %p229, %p230
    %p232 = scmp.ne.s32.totalorder %s224, %s227
    %p233 = scmp.eq.s32.totalorder %s15, 0
    %p234 = por %p232, %p233
    %p235 = scmp.ne.s32.totalorder %s224, %s227
    %p236 = scmp.eq.s32.totalorder %s20, 3
    %p237 = por %p235, %p236
    %p238 = scmp.ne.s32.totalorder %s227, %s228
    %p239 = scmp.eq.s32.totalorder %s20, 0
    %p240 = por %p238, %p239
    %p241 = scmp.ne.s32.totalorder %s227, %s228
    %p242 = scmp.eq.s32.totalorder %s21, 3
    %p243 = por %p241, %p242
    %p245 = scmp.ne.s32.totalorder %s228, %s244
    %p246 = scmp.eq.s32.totalorder %s21, 0
    %p247 = por %p245, %p246
    %p248 = scmp.le.s32.totalorder 1, %s15
    %p249 = scmp.lt.s32.totalorder %s15, 5
    %p250 = pnand %p248, %p249
    %p251 = pneg %p250
    // Predicated region
    $region9: #{tpu_custom_call.1} parent=5 // pred_check
      _
    $region10: #{tpu_custom_call.1} parent=5 // pred_check_branch
      %253 = sbr.rel (%p250) target = $region12
    $region11: #{tpu_custom_call.1} parent=5 // pred_region
      %s254 = ssub.s32 %s15, 1
      // Predicated region
      $region13: #{tpu_custom_call.1} parent=11 // pred_check
        %p255 = pneg %p88
      $region14: #{tpu_custom_call.1} parent=11 // pred_check_branch
        %257 = sbr.rel (%p255) target = $region16
      $region15: #{tpu_custom_call.1} parent=11 // pred_region
        _
      $region16: #{tpu_custom_call.1} parent=11 // pred_fallthru
        _
      // Predicated region
      $region17: #{tpu_custom_call.1} parent=11 // pred_check
        %p258 = pneg %p109
      $region18: #{tpu_custom_call.1} parent=11 // pred_check_branch
        %260 = sbr.rel (%p258) target = $region20
      $region19: #{tpu_custom_call.1} parent=11 // pred_region
        _
      $region20: #{tpu_custom_call.1} parent=11 // pred_fallthru
        _
      // Predicated region
      $region21: #{tpu_custom_call.1} parent=11 // pred_check
        %p261 = pneg %p130
      $region22: #{tpu_custom_call.1} parent=11 // pred_check_branch
        %263 = sbr.rel (%p261) target = $region24
      $region23: #{tpu_custom_call.1} parent=11 // pred_region
        _
      $region24: #{tpu_custom_call.1} parent=11 // pred_fallthru
        _
      // Predicated region
      $region25: #{tpu_custom_call.1} parent=11 // pred_check
        %p264 = pneg %p151
      $region26: #{tpu_custom_call.1} parent=11 // pred_check_branch
        %266 = sbr.rel (%p264) target = $region28
      $region27: #{tpu_custom_call.1} parent=11 // pred_region
        _
      $region28: #{tpu_custom_call.1} parent=11 // pred_fallthru
        _
      // Predicated region
      $region29: #{tpu_custom_call.1} parent=11 // pred_check
        %p267 = pneg %p172
      $region30: #{tpu_custom_call.1} parent=11 // pred_check_branch
        %269 = sbr.rel (%p267) target = $region32
      $region31: #{tpu_custom_call.1} parent=11 // pred_region
        _
      $region32: #{tpu_custom_call.1} parent=11 // pred_fallthru
        _
      // Predicated region
      $region33: #{tpu_custom_call.1} parent=11 // pred_check
        %p270 = pneg %p193
      $region34: #{tpu_custom_call.1} parent=11 // pred_check_branch
        %272 = sbr.rel (%p270) target = $region36
      $region35: #{tpu_custom_call.1} parent=11 // pred_region
        _
      $region36: #{tpu_custom_call.1} parent=11 // pred_fallthru
        _
      // Predicated region
      $region37: #{tpu_custom_call.1} parent=11 // pred_check
        %p273 = pneg %p214
      $region38: #{tpu_custom_call.1} parent=11 // pred_check_branch
        %275 = sbr.rel (%p273) target = $region40
      $region39: #{tpu_custom_call.1} parent=11 // pred_region
        _
      $region40: #{tpu_custom_call.1} parent=11 // pred_fallthru
        _
    $region12: #{tpu_custom_call.1} parent=5 // pred_fallthru
      _
    %p276 = scmp.lt.s32.totalorder %s15, 4
    // Predicated region
    $region41: #{tpu_custom_call.1} parent=5 // pred_check
      %p277 = pneg %p276
    $region42: #{tpu_custom_call.1} parent=5 // pred_check_branch
      %279 = sbr.rel (%p277) target = $region44
    $region43: #{tpu_custom_call.1} parent=5 // pred_region
      // Predicated region
      $region45: #{tpu_custom_call.1} parent=43 // pred_check
        %p280 = pneg %p35
      $region46: #{tpu_custom_call.1} parent=43 // pred_check_branch
        %282 = sbr.rel (%p280) target = $region48
      $region47: #{tpu_custom_call.1} parent=43 // pred_region
        %s283 = smul.u32 8, %s15
        %p284 = scmp.lt.s32.totalorder %s283, 31
        %s285 = scalar_select %p284, %s283, 31
        %s286 = smul.addr %s285, 8
        %s287 = scalar_lea.vmem %s0, %s286
        %s288 = smul.u32 8, %s15
      $region48: #{tpu_custom_call.1} parent=43 // pred_fallthru
        _
      // Predicated region
      $region49: #{tpu_custom_call.1} parent=43 // pred_check
        %p289 = pneg %p61
      $region50: #{tpu_custom_call.1} parent=43 // pred_check_branch
        %291 = sbr.rel (%p289) target = $region52
      $region51: #{tpu_custom_call.1} parent=43 // pred_region
        %s292 = smul.u32 8, %s15
        %p293 = scmp.lt.s32.totalorder %s292, 31
        %s294 = scalar_select %p293, %s292, 31
        %s295 = smul.addr %s294, 8
        %s296 = scalar_lea.vmem %s1, %s295
        %s297 = smul.u32 8, %s15
      $region52: #{tpu_custom_call.1} parent=43 // pred_fallthru
        _
    $region44: #{tpu_custom_call.1} parent=5 // pred_fallthru
      _
    %p298 = scmp.le.s32.totalorder 1, %s15
    %p299 = scmp.lt.s32.totalorder %s15, 5
    %p300 = pnand %p298, %p299
    %p301 = pneg %p300
    // Predicated region
    $region53: #{tpu_custom_call.1} parent=5 // pred_check
      _
    $region54: #{tpu_custom_call.1} parent=5 // pred_check_branch
      %303 = sbr.rel (%p300) target = $region56
    $region55: #{tpu_custom_call.1} parent=5 // pred_region
      %s304 = ssub.s32 %s15, 1
      %s305 = smul.u32 8, %s20
      %p306 = scmp.lt.s32.totalorder %s305, 31
      %s307 = scalar_select %p306, %s305, 31
      %s308 = smul.addr %s307, 8
      %s309 = scalar_lea.vmem %s0, %s308
      %p310 = pneg %p41
      %p311 = pneg %p38
      %s312 = smul.u32 8, %s20
      %p313 = scmp.lt.s32.totalorder %s312, 31
      %s314 = scalar_select %p313, %s312, 31
      %s315 = smul.addr %s314, 8
      %s316 = scalar_lea.vmem %s1, %s315
      %p317 = pneg %p67
      %p318 = pneg %p64
      %p319 = pneg %p88
      %p320 = pneg %p85
      %p321 = pneg %p109
      %p322 = pneg %p106
      %p323 = pneg %p130
      %p324 = pneg %p127
      %p325 = pneg %p151
      %p326 = pneg %p148
      %p327 = pneg %p172
      %p328 = pneg %p169
      %p329 = pneg %p193
      %p330 = pneg %p190
      %p331 = pneg %p214
      %p332 = pneg %p211
      %p333 = pneg %p240
      %p334 = pneg %p237
      %s335 = smul.u32 8, %s20
      %p336 = scmp.lt.s32.totalorder %s335, 31
      %s337 = scalar_select %p336, %s335, 31
      %s338 = smul.addr %s337, 8
      %s339 = scalar_lea.vmem %s9, %s338
      %s340 = smul.u32 8, %s20
      %p341 = scmp.lt.s32.totalorder %s340, 31
      %s342 = scalar_select %p341, %s340, 31
      %s343 = smul.addr %s342, 8
      %s344 = scalar_lea.vmem %s0, %s343
      %s345 = smul.u32 8, %s20
      %s346 = smul.u32 8, %s20
      %p347 = scmp.lt.s32.totalorder %s346, 31
      %s348 = scalar_select %p347, %s346, 31
      %s349 = smul.addr %s348, 8
      %s350 = scalar_lea.vmem %s1, %s349
      %s351 = smul.u32 8, %s20
      %s352 = smul.u32 8, %s20
      %p353 = scmp.lt.s32.totalorder %s352, 31
      %s354 = scalar_select %p353, %s352, 31
      %s355 = smul.addr %s354, 8
      %s356 = scalar_lea.vmem %s9, %s355
      %s357 = smul.u32 8, %s20
      %v359 = vld [vmem:[%s350] sm:$0xff]
      %v360 = vld [vmem:[%s350 + $0x8] sm:$0xff]
      %v361 = vld [vmem:[%s350 + $0x10] sm:$0xff]
      %v362 = vld [vmem:[%s350 + $0x18] sm:$0xff]
      %v363 = vld [vmem:[%s350 + $0x20] sm:$0xff]
      %v364 = vld [vmem:[%s350 + $0x28] sm:$0xff]
      %v365 = vld [vmem:[%s350 + $0x30] sm:$0xff]
      %v366 = vld [vmem:[%s350 + $0x38] sm:$0xff]
      %v367 = vpack.c.bf16 %v360, %v359
      %v368 = vpack.c.bf16 %v362, %v361
      %v369 = vpack.c.bf16 %v364, %v363
      %v370 = vpack.c.bf16 %v366, %v365
      %v371 = vld [vmem:[%s2] sm:$0xf]
      %v372 = vld [vmem:[%s2 + $0x4] sm:$0xf]
      %v373 = vld [vmem:[%s3] sm:$0x1]
      %v375 = vperm.slane %v373, 0
      %v379 = vunpack.c.l.b16 %v371
      %v380 = vunpack.c.l.b16 %v372
      %v381 = vpack.c.b16 %v380, %v379
      %vm383 = vcmask 130048
      %v385 = vsel %vm383, %v367, 0
      %v388 = vsel %vm383, %v368, 0
      %v391 = vsel %vm383, %v369, 0
      %v394 = vsel %vm383, %v370, 0
      %396 = vmatpush.bf16.msra.mxu0 0
      %397 = vmatpush.bf16.msra.mxu0 0
      %398 = vmatpush.bf16.msra.mxu0 0
      %399 = vmatpush.bf16.msra.mxu0 0
      %400 = vmatpush.bf16.msra.mxu0 0
      %401 = vmatpush.bf16.msra.mxu0 0
      %402 = vmatpush.bf16.msra.mxu0 0
      %403 = vmatpush.bf16.msra.mxu0 %v381
      %404 = vmatmul.bf16.gmra.mxu0 %v385
      %v405 = vpop.f32.mrf.mxu0
      %v406 = vadd.f32 %v375, %v405
      %v407 = vpop.f32.mrf.mxu0
      %v408 = vadd.f32 %v375, %v407
      %409 = vmatmul.bf16.gmra.mxu0 %v388
      %v410 = vpop.f32.mrf.mxu0
      %v411 = vadd.f32 %v375, %v410
      %v412 = vpop.f32.mrf.mxu0
      %v413 = vadd.f32 %v375, %v412
      %414 = vmatmul.bf16.gmra.mxu0 %v391
      %v415 = vpop.f32.mrf.mxu0
      %v416 = vadd.f32 %v375, %v415
      %v417 = vpop.f32.mrf.mxu0
      %v418 = vadd.f32 %v375, %v417
      %419 = vmatmul.bf16.gmra.mxu0 %v394
      %v420 = vpop.f32.mrf.mxu0
      %v421 = vadd.f32 %v375, %v420
      %v422 = vpop.f32.mrf.mxu0
      %v423 = vadd.f32 %v375, %v422
      %424 = vdwg.mxu0
      %v425 = vmax.f32 %v406, 0.0
      %v426 = vmax.f32 %v408, 0.0
      %v427 = vmax.f32 %v411, 0.0
      %v428 = vmax.f32 %v413, 0.0
      %v429 = vmax.f32 %v416, 0.0
      %v430 = vmax.f32 %v418, 0.0
      %v431 = vmax.f32 %v421, 0.0
      %v432 = vmax.f32 %v423, 0.0
      %v433 = vld [vmem:[%s344] sm:$0xff]
      %v434 = vld [vmem:[%s344 + $0x8] sm:$0xff]
      %v435 = vld [vmem:[%s344 + $0x10] sm:$0xff]
      %v436 = vld [vmem:[%s344 + $0x18] sm:$0xff]
      %v437 = vld [vmem:[%s344 + $0x20] sm:$0xff]
      %v438 = vld [vmem:[%s344 + $0x28] sm:$0xff]
      %v439 = vld [vmem:[%s344 + $0x30] sm:$0xff]
      %v440 = vld [vmem:[%s344 + $0x38] sm:$0xff]
      %v441 = vpack.c.bf16 %v434, %v433
      %v442 = vpack.c.bf16 %v436, %v435
      %v443 = vpack.c.bf16 %v438, %v437
      %v444 = vpack.c.bf16 %v440, %v439
      %v445 = vld [vmem:[%s4] sm:$0xf]
      %v446 = vld [vmem:[%s4 + $0x4] sm:$0xf]
      %v447 = vld [vmem:[%s4 + $0x8] sm:$0xf]
      %v448 = vld [vmem:[%s4 + $0xc] sm:$0xf]
      %v449 = vld [vmem:[%s4 + $0x10] sm:$0xf]
      %v450 = vld [vmem:[%s4 + $0x14] sm:$0xf]
      %v451 = vld [vmem:[%s4 + $0x18] sm:$0xf]
      %v452 = vld [vmem:[%s4 + $0x1c] sm:$0xf]
      %v453 = vpack.c.bf16 %v426, %v425
      %v454 = vpack.c.bf16 %v428, %v427
      %v455 = vpack.c.bf16 %v430, %v429
      %v456 = vpack.c.bf16 %v432, %v431
      %v457 = vld [vmem:[%s5] sm:$0xf]
      %v458 = vld [vmem:[%s5 + $0x4] sm:$0xf]
      %v459 = vld [vmem:[%s5 + $0x8] sm:$0xf]
      %v460 = vld [vmem:[%s5 + $0xc] sm:$0xf]
      %v461 = vld [vmem:[%s5 + $0x10] sm:$0xf]
      %v462 = vld [vmem:[%s5 + $0x14] sm:$0xf]
      %v463 = vld [vmem:[%s5 + $0x18] sm:$0xf]
      %v464 = vld [vmem:[%s5 + $0x1c] sm:$0xf]
      %v465 = vld [vmem:[%s5 + $0x20] sm:$0xf]
      %v466 = vld [vmem:[%s5 + $0x24] sm:$0xf]
      %v467 = vld [vmem:[%s5 + $0x28] sm:$0xf]
      %v468 = vld [vmem:[%s5 + $0x2c] sm:$0xf]
      %v469 = vld [vmem:[%s5 + $0x30] sm:$0xf]
      %v470 = vld [vmem:[%s5 + $0x34] sm:$0xf]
      %v471 = vld [vmem:[%s5 + $0x38] sm:$0xf]
      %v472 = vld [vmem:[%s5 + $0x3c] sm:$0xf]
      %v489 = vunpack.c.l.b16 %v457
      %v490 = vunpack.c.l.b16 %v458
      %v491 = vunpack.c.l.b16 %v459
      %v492 = vunpack.c.l.b16 %v460
      %v493 = vunpack.c.l.b16 %v461
      %v494 = vunpack.c.l.b16 %v462
      %v495 = vunpack.c.l.b16 %v463
      %v496 = vunpack.c.l.b16 %v464
      %v497 = vunpack.c.l.b16 %v465
      %v498 = vunpack.c.l.b16 %v466
      %v499 = vunpack.c.l.b16 %v467
      %v500 = vunpack.c.l.b16 %v468
      %v501 = vunpack.c.l.b16 %v469
      %v502 = vunpack.c.l.b16 %v470
      %v503 = vunpack.c.l.b16 %v471
      %v504 = vunpack.c.l.b16 %v472
      %v505 = vpack.c.b16 %v490, %v489
      %v506 = vpack.c.b16 %v492, %v491
      %v507 = vpack.c.b16 %v494, %v493
      %v508 = vpack.c.b16 %v496, %v495
      %v509 = vpack.c.b16 %v498, %v497
      %v510 = vpack.c.b16 %v500, %v499
      %v511 = vpack.c.b16 %v502, %v501
      %v512 = vpack.c.b16 %v504, %v503
      %521 = vmatpush.bf16.msra.mxu0 %v512
      %522 = vmatpush.bf16.msra.mxu0 %v511
      %523 = vmatpush.bf16.msra.mxu0 %v510
      %524 = vmatpush.bf16.msra.mxu0 %v509
      %525 = vmatpush.bf16.msra.mxu0 %v508
      %526 = vmatpush.bf16.msra.mxu0 %v507
      %527 = vmatpush.bf16.msra.mxu0 %v506
      %528 = vmatpush.bf16.msra.mxu0 %v505
      %529 = vmatmul.bf16.gmra.mxu0 %v453
      %v530 = vpop.f32.mrf.mxu0
      %v531 = vadd.f32 0.0, %v530
      %v532 = vpop.f32.mrf.mxu0
      %v533 = vadd.f32 0.0, %v532
      %534 = vmatmul.bf16.gmra.mxu0 %v454
      %v535 = vpop.f32.mrf.mxu0
      %v536 = vadd.f32 0.0, %v535
      %v537 = vpop.f32.mrf.mxu0
      %v538 = vadd.f32 0.0, %v537
      %539 = vmatmul.bf16.gmra.mxu0 %v455
      %v540 = vpop.f32.mrf.mxu0
      %v541 = vadd.f32 0.0, %v540
      %v542 = vpop.f32.mrf.mxu0
      %v543 = vadd.f32 0.0, %v542
      %544 = vmatmul.bf16.gmra.mxu0 %v456
      %v545 = vpop.f32.mrf.mxu0
      %v546 = vadd.f32 0.0, %v545
      %v547 = vpop.f32.mrf.mxu0
      %v548 = vadd.f32 0.0, %v547
      %549 = vdwg.mxu0
      %v558 = vunpack.c.l.b16 %v445
      %v559 = vunpack.c.l.b16 %v446
      %v560 = vunpack.c.l.b16 %v447
      %v561 = vunpack.c.l.b16 %v448
      %v562 = vunpack.c.l.b16 %v449
      %v563 = vunpack.c.l.b16 %v450
      %v564 = vunpack.c.l.b16 %v451
      %v565 = vunpack.c.l.b16 %v452
      %v566 = vpack.c.b16 %v559, %v558
      %v567 = vpack.c.b16 %v561, %v560
      %v568 = vpack.c.b16 %v563, %v562
      %v569 = vpack.c.b16 %v565, %v564
      %vm574 = vcmask 523264
      %v576 = vsel %vm574, %v441, 0
      %v579 = vsel %vm574, %v442, 0
      %v582 = vsel %vm574, %v443, 0
      %v585 = vsel %vm574, %v444, 0
      %587 = vmatpush.bf16.msra.mxu0 0
      %588 = vmatpush.bf16.msra.mxu0 0
      %589 = vmatpush.bf16.msra.mxu0 0
      %590 = vmatpush.bf16.msra.mxu0 0
      %591 = vmatpush.bf16.msra.mxu0 %v569
      %592 = vmatpush.bf16.msra.mxu0 %v568
      %593 = vmatpush.bf16.msra.mxu0 %v567
      %594 = vmatpush.bf16.msra.mxu0 %v566
      %595 = vmatmul.bf16.gmra.mxu0 %v576
      %v596 = vpop.f32.mrf.mxu0
      %v597 = vadd.f32 %v531, %v596
      %v598 = vpop.f32.mrf.mxu0
      %v599 = vadd.f32 %v533, %v598
      %600 = vmatmul.bf16.gmra.mxu0 %v579
      %v601 = vpop.f32.mrf.mxu0
      %v602 = vadd.f32 %v536, %v601
      %v603 = vpop.f32.mrf.mxu0
      %v604 = vadd.f32 %v538, %v603
      %605 = vmatmul.bf16.gmra.mxu0 %v582
      %v606 = vpop.f32.mrf.mxu0
      %v607 = vadd.f32 %v541, %v606
      %v608 = vpop.f32.mrf.mxu0
      %v609 = vadd.f32 %v543, %v608
      %610 = vmatmul.bf16.gmra.mxu0 %v585
      %v611 = vpop.f32.mrf.mxu0
      %v612 = vadd.f32 %v546, %v611
      %v613 = vpop.f32.mrf.mxu0
      %v614 = vadd.f32 %v548, %v613
      %615 = vdwg.mxu0
      %v616 = vld [vmem:[%s6] sm:$0x1]
      %v618 = vperm.slane %v616, 0
      %v620 = vadd.f32 %v597, %v618
      %v621 = vadd.f32 %v599, %v618
      %v622 = vadd.f32 %v602, %v618
      %v623 = vadd.f32 %v604, %v618
      %v624 = vadd.f32 %v607, %v618
      %v625 = vadd.f32 %v609, %v618
      %v626 = vadd.f32 %v612, %v618
      %v627 = vadd.f32 %v614, %v618
      %v628 = vmax.f32 %v620, 0.0
      %v629 = vmax.f32 %v621, 0.0
      %v630 = vmax.f32 %v622, 0.0
      %v631 = vmax.f32 %v623, 0.0
      %v632 = vmax.f32 %v624, 0.0
      %v633 = vmax.f32 %v625, 0.0
      %v634 = vmax.f32 %v626, 0.0
      %v635 = vmax.f32 %v627, 0.0
      %v636 = vpack.c.bf16 %v629, %v628
      %v637 = vpack.c.bf16 %v631, %v630
      %v638 = vpack.c.bf16 %v633, %v632
      %v639 = vpack.c.bf16 %v635, %v634
      %v640 = vld [vmem:[%s7] sm:$0xf]
      %v641 = vld [vmem:[%s7 + $0x4] sm:$0xf]
      %v642 = vld [vmem:[%s7 + $0x8] sm:$0xf]
      %v643 = vld [vmem:[%s7 + $0xc] sm:$0xf]
      %v644 = vld [vmem:[%s7 + $0x10] sm:$0xf]
      %v645 = vld [vmem:[%s7 + $0x14] sm:$0xf]
      %v646 = vld [vmem:[%s7 + $0x18] sm:$0xf]
      %v647 = vld [vmem:[%s7 + $0x1c] sm:$0xf]
      %v648 = vld [vmem:[%s7 + $0x20] sm:$0xf]
      %v649 = vld [vmem:[%s7 + $0x24] sm:$0xf]
      %v650 = vld [vmem:[%s7 + $0x28] sm:$0xf]
      %v651 = vld [vmem:[%s7 + $0x2c] sm:$0xf]
      %v652 = vld [vmem:[%s7 + $0x30] sm:$0xf]
      %v653 = vld [vmem:[%s7 + $0x34] sm:$0xf]
      %v654 = vld [vmem:[%s7 + $0x38] sm:$0xf]
      %v655 = vld [vmem:[%s7 + $0x3c] sm:$0xf]
      %v656 = vld [vmem:[%s8] sm:$0x1]
      %v658 = vperm.slane %v656, 0
      %v676 = vunpack.c.l.b16 %v640
      %v677 = vunpack.c.l.b16 %v641
      %v678 = vunpack.c.l.b16 %v642
      %v679 = vunpack.c.l.b16 %v643
      %v680 = vunpack.c.l.b16 %v644
      %v681 = vunpack.c.l.b16 %v645
      %v682 = vunpack.c.l.b16 %v646
      %v683 = vunpack.c.l.b16 %v647
      %v684 = vunpack.c.l.b16 %v648
      %v685 = vunpack.c.l.b16 %v649
      %v686 = vunpack.c.l.b16 %v650
      %v687 = vunpack.c.l.b16 %v651
      %v688 = vunpack.c.l.b16 %v652
      %v689 = vunpack.c.l.b16 %v653
      %v690 = vunpack.c.l.b16 %v654
      %v691 = vunpack.c.l.b16 %v655
      %v692 = vpack.c.b16 %v677, %v676
      %v693 = vpack.c.b16 %v679, %v678
      %v694 = vpack.c.b16 %v681, %v680
      %v695 = vpack.c.b16 %v683, %v682
      %v696 = vpack.c.b16 %v685, %v684
      %v697 = vpack.c.b16 %v687, %v686
      %v698 = vpack.c.b16 %v689, %v688
      %v699 = vpack.c.b16 %v691, %v690
      %708 = vmatpush.bf16.msra.mxu0 %v699
      %709 = vmatpush.bf16.msra.mxu0 %v698
      %710 = vmatpush.bf16.msra.mxu0 %v697
      %711 = vmatpush.bf16.msra.mxu0 %v696
      %712 = vmatpush.bf16.msra.mxu0 %v695
      %713 = vmatpush.bf16.msra.mxu0 %v694
      %714 = vmatpush.bf16.msra.mxu0 %v693
      %715 = vmatpush.bf16.msra.mxu0 %v692
      %716 = vmatmul.bf16.gmra.mxu0 %v636
      %v717 = vpop.f32.mrf.mxu0
      %v718 = vadd.f32 %v658, %v717
      %v719 = vpop.f32.mrf.mxu0
      %v720 = vadd.f32 %v658, %v719
      %721 = vmatmul.bf16.gmra.mxu0 %v637
      %v722 = vpop.f32.mrf.mxu0
      %v723 = vadd.f32 %v658, %v722
      %v724 = vpop.f32.mrf.mxu0
      %v725 = vadd.f32 %v658, %v724
      %726 = vmatmul.bf16.gmra.mxu0 %v638
      %v727 = vpop.f32.mrf.mxu0
      %v728 = vadd.f32 %v658, %v727
      %v729 = vpop.f32.mrf.mxu0
      %v730 = vadd.f32 %v658, %v729
      %731 = vmatmul.bf16.gmra.mxu0 %v639
      %v732 = vpop.f32.mrf.mxu0
      %v733 = vadd.f32 %v658, %v732
      %v734 = vpop.f32.mrf.mxu0
      %v735 = vadd.f32 %v658, %v734
      %736 = vdwg.mxu0
      %737 = vmax.xlane.f32.xlu0 %v718
      %v738 = vpop.xlane.xlu0 %737
      %739 = vmax.xlane.f32.xlu0 %v720
      %v740 = vpop.xlane.xlu0 %739
      %741 = vmax.xlane.f32.xlu0 %v723
      %v742 = vpop.xlane.xlu0 %741
      %743 = vmax.xlane.f32.xlu0 %v725
      %v744 = vpop.xlane.xlu0 %743
      %745 = vmax.xlane.f32.xlu0 %v728
      %v746 = vpop.xlane.xlu0 %745
      %747 = vmax.xlane.f32.xlu0 %v730
      %v748 = vpop.xlane.xlu0 %747
      %749 = vmax.xlane.f32.xlu0 %v733
      %v750 = vpop.xlane.xlu0 %749
      %751 = vmax.xlane.f32.xlu0 %v735
      %v752 = vpop.xlane.xlu0 %751
      %v753 = vsub.f32 %v718, %v738
      %v754 = vsub.f32 %v720, %v740
      %v755 = vsub.f32 %v723, %v742
      %v756 = vsub.f32 %v725, %v744
      %v757 = vsub.f32 %v728, %v746
      %v758 = vsub.f32 %v730, %v748
      %v759 = vsub.f32 %v733, %v750
      %v760 = vsub.f32 %v735, %v752
      %v761 = vmul.f32 %v753, 1.442695
      %v762 = vpow.pop %v761
      %v763 = vmul.f32 %v754, 1.442695
      %v764 = vpow.pop %v763
      %v765 = vmul.f32 %v755, 1.442695
      %v766 = vpow.pop %v765
      %v767 = vmul.f32 %v756, 1.442695
      %v768 = vpow.pop %v767
      %v769 = vmul.f32 %v757, 1.442695
      %v770 = vpow.pop %v769
      %v771 = vmul.f32 %v758, 1.442695
      %v772 = vpow.pop %v771
      %v773 = vmul.f32 %v759, 1.442695
      %v774 = vpow.pop %v773
      %v775 = vmul.f32 %v760, 1.442695
      %v776 = vpow.pop %v775
      %777 = vadd.xlane.f32.xlu0 %v762
      %v778 = vpop.xlane.xlu0 %777
      %779 = vadd.xlane.f32.xlu0 %v764
      %v780 = vpop.xlane.xlu0 %779
      %781 = vadd.xlane.f32.xlu0 %v766
      %v782 = vpop.xlane.xlu0 %781
      %783 = vadd.xlane.f32.xlu0 %v768
      %v784 = vpop.xlane.xlu0 %783
      %785 = vadd.xlane.f32.xlu0 %v770
      %v786 = vpop.xlane.xlu0 %785
      %787 = vadd.xlane.f32.xlu0 %v772
      %v788 = vpop.xlane.xlu0 %787
      %789 = vadd.xlane.f32.xlu0 %v774
      %v790 = vpop.xlane.xlu0 %789
      %791 = vadd.xlane.f32.xlu0 %v776
      %v792 = vpop.xlane.xlu0 %791
      %v793 = vrcp.pop %v778
      %v794 = vmul.f32 %v778, %v793
      %v795 = vsub.f32 1.0, %v794
      %v796 = vmul.f32 %v793, %v795
      %v797 = vadd.f32 %v793, %v796
      %vm798 = vweird.f32 %v778
      %vm799 = vweird.f32 %v793
      %vm800 = vmor %vm798, %vm799
      %v801 = vsel %vm800, %v793, %v797
      %v802 = vand.u32 2147483647, %v778
      %vm803 = vcmp.eq.f32.partialorder %v802, 8.507059e+37
      %v804 = vand.u32 %v778, 2147483648
      %v805 = vor.u32 1.1754944e-38, %v804
      %v806 = vsel %vm803, %v805, %v801
      %v807 = vmul.f32 %v762, %v806
      %v808 = vrcp.pop %v780
      %v809 = vmul.f32 %v780, %v808
      %v810 = vsub.f32 1.0, %v809
      %v811 = vmul.f32 %v808, %v810
      %v812 = vadd.f32 %v808, %v811
      %vm813 = vweird.f32 %v780
      %vm814 = vweird.f32 %v808
      %vm815 = vmor %vm813, %vm814
      %v816 = vsel %vm815, %v808, %v812
      %v817 = vand.u32 2147483647, %v780
      %vm818 = vcmp.eq.f32.partialorder %v817, 8.507059e+37
      %v819 = vand.u32 %v780, 2147483648
      %v820 = vor.u32 1.1754944e-38, %v819
      %v821 = vsel %vm818, %v820, %v816
      %v822 = vmul.f32 %v764, %v821
      %v823 = vrcp.pop %v782
      %v824 = vmul.f32 %v782, %v823
      %v825 = vsub.f32 1.0, %v824
      %v826 = vmul.f32 %v823, %v825
      %v827 = vadd.f32 %v823, %v826
      %vm828 = vweird.f32 %v782
      %vm829 = vweird.f32 %v823
      %vm830 = vmor %vm828, %vm829
      %v831 = vsel %vm830, %v823, %v827
      %v832 = vand.u32 2147483647, %v782
      %vm833 = vcmp.eq.f32.partialorder %v832, 8.507059e+37
      %v834 = vand.u32 %v782, 2147483648
      %v835 = vor.u32 1.1754944e-38, %v834
      %v836 = vsel %vm833, %v835, %v831
      %v837 = vmul.f32 %v766, %v836
      %v838 = vrcp.pop %v784
      %v839 = vmul.f32 %v784, %v838
      %v840 = vsub.f32 1.0, %v839
      %v841 = vmul.f32 %v838, %v840
      %v842 = vadd.f32 %v838, %v841
      %vm843 = vweird.f32 %v784
      %vm844 = vweird.f32 %v838
      %vm845 = vmor %vm843, %vm844
      %v846 = vsel %vm845, %v838, %v842
      %v847 = vand.u32 2147483647, %v784
      %vm848 = vcmp.eq.f32.partialorder %v847, 8.507059e+37
      %v849 = vand.u32 %v784, 2147483648
      %v850 = vor.u32 1.1754944e-38, %v849
      %v851 = vsel %vm848, %v850, %v846
      %v852 = vmul.f32 %v768, %v851
      %v853 = vrcp.pop %v786
      %v854 = vmul.f32 %v786, %v853
      %v855 = vsub.f32 1.0, %v854
      %v856 = vmul.f32 %v853, %v855
      %v857 = vadd.f32 %v853, %v856
      %vm858 = vweird.f32 %v786
      %vm859 = vweird.f32 %v853
      %vm860 = vmor %vm858, %vm859
      %v861 = vsel %vm860, %v853, %v857
      %v862 = vand.u32 2147483647, %v786
      %vm863 = vcmp.eq.f32.partialorder %v862, 8.507059e+37
      %v864 = vand.u32 %v786, 2147483648
      %v865 = vor.u32 1.1754944e-38, %v864
      %v866 = vsel %vm863, %v865, %v861
      %v867 = vmul.f32 %v770, %v866
      %v868 = vrcp.pop %v788
      %v869 = vmul.f32 %v788, %v868
      %v870 = vsub.f32 1.0, %v869
      %v871 = vmul.f32 %v868, %v870
      %v872 = vadd.f32 %v868, %v871
      %vm873 = vweird.f32 %v788
      %vm874 = vweird.f32 %v868
      %vm875 = vmor %vm873, %vm874
      %v876 = vsel %vm875, %v868, %v872
      %v877 = vand.u32 2147483647, %v788
      %vm878 = vcmp.eq.f32.partialorder %v877, 8.507059e+37
      %v879 = vand.u32 %v788, 2147483648
      %v880 = vor.u32 1.1754944e-38, %v879
      %v881 = vsel %vm878, %v880, %v876
      %v882 = vmul.f32 %v772, %v881
      %v883 = vrcp.pop %v790
      %v884 = vmul.f32 %v790, %v883
      %v885 = vsub.f32 1.0, %v884
      %v886 = vmul.f32 %v883, %v885
      %v887 = vadd.f32 %v883, %v886
      %vm888 = vweird.f32 %v790
      %vm889 = vweird.f32 %v883
      %vm890 = vmor %vm888, %vm889
      %v891 = vsel %vm890, %v883, %v887
      %v892 = vand.u32 2147483647, %v790
      %vm893 = vcmp.eq.f32.partialorder %v892, 8.507059e+37
      %v894 = vand.u32 %v790, 2147483648
      %v895 = vor.u32 1.1754944e-38, %v894
      %v896 = vsel %vm893, %v895, %v891
      %v897 = vmul.f32 %v774, %v896
      %v898 = vrcp.pop %v792
      %v899 = vmul.f32 %v792, %v898
      %v900 = vsub.f32 1.0, %v899
      %v901 = vmul.f32 %v898, %v900
      %v902 = vadd.f32 %v898, %v901
      %vm903 = vweird.f32 %v792
      %vm904 = vweird.f32 %v898
      %vm905 = vmor %vm903, %vm904
      %v906 = vsel %vm905, %v898, %v902
      %v907 = vand.u32 2147483647, %v792
      %vm908 = vcmp.eq.f32.partialorder %v907, 8.507059e+37
      %v909 = vand.u32 %v792, 2147483648
      %v910 = vor.u32 1.1754944e-38, %v909
      %v911 = vsel %vm908, %v910, %v906
      %v912 = vmul.f32 %v776, %v911
      %vm913 = vcmask 31744
      %914 = vst.msk [vmem:[%s356] sm:$0xff] %vm913, %v807
      %915 = vst.msk [vmem:[%s356 + $0x8] sm:$0xff] %vm913, %v822
      %916 = vst.msk [vmem:[%s356 + $0x10] sm:$0xff] %vm913, %v837
      %917 = vst.msk [vmem:[%s356 + $0x18] sm:$0xff] %vm913, %v852
      %918 = vst.msk [vmem:[%s356 + $0x20] sm:$0xff] %vm913, %v867
      %919 = vst.msk [vmem:[%s356 + $0x28] sm:$0xff] %vm913, %v882
      %920 = vst.msk [vmem:[%s356 + $0x30] sm:$0xff] %vm913, %v897
      %921 = vst.msk [vmem:[%s356 + $0x38] sm:$0xff] %vm913, %v912
      %s922 = smul.u32 8, %s20
      %p923 = scmp.lt.s32.totalorder %s922, 31
      %s924 = scalar_select %p923, %s922, 31
      %s925 = smul.addr %s924, 8
      %s926 = scalar_lea.vmem %s9, %s925
      // Predicated region
      $region57: #{tpu_custom_call.1} parent=55 // pred_check
        %p927 = pneg %p237
      $region58: #{tpu_custom_call.1} parent=55 // pred_check_branch
        %929 = sbr.rel (%p927) target = $region60
      $region59: #{tpu_custom_call.1} parent=55 // pred_region
        %s930 = smul.u32 8, %s20
      $region60: #{tpu_custom_call.1} parent=55 // pred_fallthru
        _
    $region56: #{tpu_custom_call.1} parent=5 // pred_fallthru
      _
    %p931 = scmp.le.s32.totalorder 2, %s15
    // Predicated region
    $region61: #{tpu_custom_call.1} parent=5 // pred_check
      %p932 = pneg %p931
    $region62: #{tpu_custom_call.1} parent=5 // pred_check_branch
      %934 = sbr.rel (%p932) target = $region64
    $region63: #{tpu_custom_call.1} parent=5 // pred_region
      %s935 = ssub.s32 %s15, 2
      // Predicated region
      $region65: #{tpu_custom_call.1} parent=63 // pred_check
        %p936 = pneg %p243
      $region66: #{tpu_custom_call.1} parent=63 // pred_check_branch
        %938 = sbr.rel (%p936) target = $region68
      $region67: #{tpu_custom_call.1} parent=63 // pred_region
        %s939 = smul.u32 8, %s21
        %p940 = scmp.lt.s32.totalorder %s939, 31
        %s941 = scalar_select %p940, %s939, 31
        %s942 = smul.addr %s941, 8
        %s943 = scalar_lea.vmem %s9, %s942
      $region68: #{tpu_custom_call.1} parent=63 // pred_fallthru
        _
    $region64: #{tpu_custom_call.1} parent=5 // pred_fallthru
      _
  $region6: #{tpu_custom_call.1} parent=0 // loop_footer
    %s19 = sadd.s32 1, %s15
  $region7: #{tpu_custom_call.1} parent=0 // loop_footer_branch
    %14 = sbr.rel target = $region3
  $region8: #{tpu_custom_call.1} parent=0 // loop_exit
    _

</llo_original>
